<compile_context>
chip_gen: v7x
topology: tpu7x:2x2x1
jax: 0.10.0
libtpu: 0.0.40
codegen_flags: <defaults>
</compile_context>

<pallas_src>
import functools
import math

import jax
import jax.numpy as jnp
from jax.experimental import pallas as pl
from jax.experimental.pallas import tpu as pltpu


# ----------------------------------------------------------------------------
# tile-size helpers (respect (8,128) block constraints, fall back to full dim)
# ----------------------------------------------------------------------------

def _row_tile(n, cap):          # second-to-last ("sublane") dims: multiple of 8
    if n <= cap:
        return n
    t = (cap // 8) * 8
    while t >= 8:
        if n % t == 0:
            return t
        t -= 8
    return n


def _lane_tile(n, cap):         # last ("lane") dims: multiple of 128
    if n <= cap:
        return n
    t = (cap // 128) * 128
    while t >= 128:
        if n % t == 0:
            return t
        t -= 128
    return n


# ----------------------------------------------------------------------------
# Kernel 0: tiled matmul + bias  -- 1x1 conv proj and the one-time pos@Wqk
# ----------------------------------------------------------------------------

def _matmul_kernel(x_ref, w_ref, b_ref, o_ref, acc_ref):
    k = pl.program_id(2)

    @pl.when(k == 0)
    def _():
        acc_ref[...] = jnp.zeros_like(acc_ref)

    acc_ref[...] += jnp.dot(x_ref[...], w_ref[...],
                            preferred_element_type=jnp.float32)

    @pl.when(k == pl.num_programs(2) - 1)
    def _():
        o_ref[...] = (acc_ref[...] + b_ref[...]).astype(o_ref.dtype)


def linear(x, w, b, *, out_dtype=None, tm_cap=512, tn_cap=256, tk_cap=512,
           vmem_limit_bytes=None):
    """x @ w + b with row/col/K tiling, f32 VMEM accumulator, pipelined DMA."""
    N, K = x.shape
    M = w.shape[1]
    out_dtype = out_dtype or x.dtype
    tm = _row_tile(N, tm_cap)
    tn = _lane_tile(M, tn_cap)
    tk = _lane_tile(K, tk_cap)
    grid = (N // tm, M // tn, K // tk)
    return pl.pallas_call(
        _matmul_kernel,
        grid=grid,
        in_specs=[pl.BlockSpec((tm, tk), lambda i, j, k: (i, k)),
                  pl.BlockSpec((tk, tn), lambda i, j, k: (k, j)),
                  pl.BlockSpec((1, tn), lambda i, j, k: (0, j))],
        out_specs=pl.BlockSpec((tm, tn), lambda i, j, k: (i, j)),
        out_shape=jax.ShapeDtypeStruct((N, M), out_dtype),
        scratch_shapes=[pltpu.VMEM((tm, tn), jnp.float32)],
        compiler_params=pltpu.CompilerParams(
            dimension_semantics=("parallel", "parallel", "arbitrary"),
            vmem_limit_bytes=vmem_limit_bytes),
    )(x, w, b)


# ----------------------------------------------------------------------------
# Kernel 1: fused Q|K|V projection (one (D,3D) matmul), K emitted transposed
# ----------------------------------------------------------------------------

def _qkv_kernel(src_ref, posqk_ref, w_ref, b_ref, q_ref, kT_ref, v_ref,
                *, d, scale):
    x = src_ref[0]                                              # (tm, D)
    qkv = jnp.dot(x, w_ref[...],
                  preferred_element_type=jnp.float32) + b_ref[...]   # (tm, 3D)
    pqk = posqk_ref[0].astype(jnp.float32)                      # (tm, 2D) = pos@[Wq|Wk]
    q = (qkv[:, :d] + pqk[:, :d]) * scale                       # fold 1/sqrt(dh) into q
    k = qkv[:, d:2 * d] + pqk[:, d:]
    q_ref[0] = q.astype(q_ref.dtype)
    kT_ref[0] = k.T.astype(kT_ref.dtype)                        # one transpose per row tile
    v_ref[0] = qkv[:, 2 * d:].astype(v_ref.dtype)


def qkv_proj(src, pos_qk, wqkv, bqkv, *, scale, row_block=256,
             vmem_limit_bytes=None):
    """src: (B,S,D); pos_qk: (B,S,2D) = pos @ [Wq|Wk].
    Returns q:(B,S,D) (pre-scaled), kT:(B,D,S), v:(B,S,D)."""
    B, S, D = src.shape
    cd = src.dtype
    tm = _lane_tile(S, row_block)        # tm is the lane dim of the kT output block
    act = lambda last: pl.BlockSpec((1, tm, last), lambda b, i: (b, i, 0))
    full = lambda a: pl.BlockSpec(a.shape, lambda b, i: (0, 0))   # DMA'd once per call
    return pl.pallas_call(
        functools.partial(_qkv_kernel, d=D, scale=scale),
        grid=(B, S // tm),
        in_specs=[act(D), act(2 * D), full(wqkv), full(bqkv)],
        out_specs=[act(D),
                   pl.BlockSpec((1, D, tm), lambda b, i: (b, 0, i)),
                   act(D)],
        out_shape=[jax.ShapeDtypeStruct((B, S, D), cd),
                   jax.ShapeDtypeStruct((B, D, S), cd),
                   jax.ShapeDtypeStruct((B, S, D), cd)],
        compiler_params=pltpu.CompilerParams(
            dimension_semantics=("parallel", "parallel"),
            vmem_limit_bytes=vmem_limit_bytes),
    )(src, pos_qk, wqkv, bqkv)


# ----------------------------------------------------------------------------
# Kernel 2: flash-style multi-head attention with key-padding bias
#   grid = (B, S/tq, S/tkv); online-softmax scratch persists across the kv axis.
#   K arrives pre-transposed (B, D, S) -> score matmul has no in-kernel transpose.
# ----------------------------------------------------------------------------

def _attn_kernel(q_ref, kT_ref, v_ref, bias_ref, o_ref,
                 m_sc, l_sc, acc_sc, *, nhead):
    ki = pl.program_id(2)

    @pl.when(ki == 0)
    def _():
        m_sc[...] = jnp.full_like(m_sc, -jnp.inf)
        l_sc[...] = jnp.zeros_like(l_sc)
        acc_sc[...] = jnp.zeros_like(acc_sc)

    q = q_ref[0]                 # (tq, D)   pre-scaled by 1/sqrt(dh)
    kT = kT_ref[0]               # (D, tkv)
    v = v_ref[0]                 # (tkv, D)
    bias = bias_ref[0]           # (1, tkv)  additive key-padding bias (f32)
    d = q.shape[-1]
    dh = d // nhead

    # Static unroll over heads; kv_block is capped (<=256 default) so the per-head
    # (tq, tkv) temporaries keep bounded live ranges without a fori_loop.
    for h in range(nhead):
        lo, hi = h * dh, (h + 1) * dh
        s = jnp.dot(q[:, lo:hi], kT[lo:hi, :],
                    preferred_element_type=jnp.float32) + bias
        m_prev = m_sc[h]                                        # (tq, 1)
        m_new = jnp.maximum(m_prev, jnp.max(s, axis=-1, keepdims=True))
        alpha = jnp.exp(m_prev - m_new)
        p = jnp.exp(s - m_new)
        l_sc[h] = alpha * l_sc[h] + jnp.sum(p, axis=-1, keepdims=True)
        acc_sc[h] = alpha * acc_sc[h] + jnp.dot(
            p.astype(v.dtype), v[:, lo:hi], preferred_element_type=jnp.float32)
        m_sc[h] = m_new

    @pl.when(ki == pl.num_programs(2) - 1)
    def _():
        # assemble all heads and do ONE lane-dense (tq, D) store
        parts = [acc_sc[h] * pl.reciprocal(l_sc[h], approx=True)
                 for h in range(nhead)]
        o_ref[0] = jnp.concatenate(parts, axis=-1).astype(o_ref.dtype)


def attention(q, kT, v, bias, nhead, *, q_block=256, kv_block=256,
              vmem_limit_bytes=None):
    """q/v: (B,S,D) token-major (q pre-scaled); kT: (B,D,S); bias: (B,1,S) f32."""
    B, S, D = q.shape
    dh = D // nhead
    tq = _row_tile(S, q_block)
    tkv = _lane_tile(S, kv_block)        # bias / kT carry S on the lane axis
    grid = (B, S // tq, S // tkv)
    return pl.pallas_call(
        functools.partial(_attn_kernel, nhead=nhead),
        grid=grid,
        in_specs=[pl.BlockSpec((1, tq, D), lambda b, qi, ki: (b, qi, 0)),
                  pl.BlockSpec((1, D, tkv), lambda b, qi, ki: (b, 0, ki)),
                  pl.BlockSpec((1, tkv, D), lambda b, qi, ki: (b, ki, 0)),
                  pl.BlockSpec((1, 1, tkv), lambda b, qi, ki: (b, 0, ki))],
        out_specs=pl.BlockSpec((1, tq, D), lambda b, qi, ki: (b, qi, 0)),
        out_shape=jax.ShapeDtypeStruct((B, S, D), q.dtype),
        scratch_shapes=[pltpu.VMEM((nhead, tq, 1), jnp.float32),   # running max
                        pltpu.VMEM((nhead, tq, 1), jnp.float32),   # running denom
                        pltpu.VMEM((nhead, tq, dh), jnp.float32)], # running acc
        compiler_params=pltpu.CompilerParams(
            dimension_semantics=("parallel", "parallel", "arbitrary"),
            vmem_limit_bytes=vmem_limit_bytes),
    )(q, kT, v, bias)


# ----------------------------------------------------------------------------
# Kernel 3: fused out_proj + residual + LN1 + FFN(+ReLU, d_ffn-chunked) +
#           residual + LN2 in one row-tiled kernel
# ----------------------------------------------------------------------------

def _ln(y, g, b, eps):
    mean = jnp.mean(y, axis=-1, keepdims=True)
    c = y - mean
    var = jnp.mean(c * c, axis=-1, keepdims=True)
    return c * jax.lax.rsqrt(var + eps) * g + b


def _post_attn_ffn_kernel(attn_ref, res_ref, wo_ref, bo_ref, g1_ref, be1_ref,
                          w1_ref, b1_ref, w2_ref, b2_ref, g2_ref, be2_ref,
                          o_ref, *, eps, ffn_chunk):
    a = jnp.dot(attn_ref[...], wo_ref[...],
                preferred_element_type=jnp.float32) + bo_ref[...]
    h = _ln(a + res_ref[...].astype(jnp.float32),
            g1_ref[...], be1_ref[...], eps)                      # norm1 (f32)
    hb = h.astype(w1_ref.dtype)
    d_ffn = w1_ref.shape[1]
    d_out = w2_ref.shape[1]
    # d_ffn chunking: the (tm, d_ffn) intermediate never materializes (v7x VMEM).
    acc = b2_ref[...] + jnp.zeros((h.shape[0], d_out), jnp.float32)
    for c0 in range(0, d_ffn, ffn_chunk):
        c1 = c0 + ffn_chunk
        f = jnp.dot(hb, w1_ref[:, c0:c1],
                    preferred_element_type=jnp.float32) + b1_ref[:, c0:c1]
        f = jnp.maximum(f, 0.0).astype(w2_ref.dtype)             # relu
        acc = acc + jnp.dot(f, w2_ref[c0:c1, :],
                            preferred_element_type=jnp.float32)
    o_ref[...] = _ln(acc + h, g2_ref[...], be2_ref[...], eps).astype(o_ref.dtype)


def post_attn_ffn(attn2d, resid2d, lw, *, row_block=512, ffn_chunk_cap=512,
                  eps=1e-5, vmem_limit_bytes=None):
    N, D = attn2d.shape
    tm = _row_tile(N, row_block)
    d_ffn = lw['w1'].shape[1]
    ffn_chunk = _lane_tile(d_ffn, ffn_chunk_cap)
    act = pl.BlockSpec((tm, D), lambda i: (i, 0))
    full = lambda a: pl.BlockSpec(a.shape, lambda i: (0, 0))     # DMA'd once per call
    args = (attn2d, resid2d, lw['wo'], lw['bo'], lw['g1'], lw['be1'],
            lw['w1'], lw['b1'], lw['w2'], lw['b2'], lw['g2'], lw['be2'])
    in_specs = [act, act] + [full(a) for a in args[2:]]
    return pl.pallas_call(
        functools.partial(_post_attn_ffn_kernel, eps=eps, ffn_chunk=ffn_chunk),
        grid=(N // tm,),
        in_specs=in_specs,
        out_specs=act,
        out_shape=jax.ShapeDtypeStruct((N, D), attn2d.dtype),
        compiler_params=pltpu.CompilerParams(
            dimension_semantics=("parallel",),
            vmem_limit_bytes=vmem_limit_bytes),
    )(*args)


# ----------------------------------------------------------------------------
# VisionEncoder forward
# ----------------------------------------------------------------------------

def vision_encoder_forward(src, mask, pos, params, nhead, nlayer, *,
                           row_block=512, qkv_row_block=256,
                           q_block=256, kv_block=256,
                           compute_dtype=jnp.bfloat16,
                           vmem_limit_bytes=None):
    """src: (B, C, H, W) backbone feature; mask: (B, H, W) bool (True = pad);
    pos: (B, D, H, W) positional encoding.  Returns (output, mask, pos) with
    output/pos in (B, S, D) and mask (B, S), matching the PyTorch module.

    Per-generation tuning: v5e/v6e -> q_block/kv_block ~512 and
    vmem_limit_bytes ~64-96 MiB (amortize grid-step overhead, cut K/V re-reads);
    v7x -> keep defaults (64 MiB VMEM), bf16 weights + FFN chunking keep the
    fused epilogue within budget."""
    B, C, H, W = src.shape
    S = H * W
    D = params['proj_w'].shape[1]
    cd = compute_dtype
    f32 = jnp.float32

    # input_proj: 1x1 conv == per-token matmul (tokens x C @ C x D + b).
    # (C may be tiny, e.g. 4: lane-sparse but a one-time negligible cost.)
    x = jnp.transpose(src, (0, 2, 3, 1)).reshape(B * S, C).astype(cd)
    proj_w = params['proj_w'].astype(cd)
    proj_b = params['proj_b'].astype(f32)
    out2d = linear(x, proj_w, proj_b, out_dtype=cd, tm_cap=row_block,
                   vmem_limit_bytes=vmem_limit_bytes)            # (B*S, D)

    pos_flat = jnp.transpose(pos, (0, 2, 3, 1)).reshape(B, S, D)
    pos2d = pos_flat.reshape(B * S, D).astype(cd)
    mask_flat = mask.reshape(B, S)
    bias = jnp.where(mask_flat, -1e30, 0.0).astype(f32).reshape(B, 1, S)

    # All clones share one parameter set (PyTorch deepcopy of an identical layer).
    lp = params['layer']
    wqk = jnp.concatenate([lp['wq'], lp['wk']], axis=1).astype(cd)          # (D, 2D)
    wqkv = jnp.concatenate([lp['wq'], lp['wk'], lp['wv']], axis=1).astype(cd)  # (D, 3D)
    bqkv = jnp.concatenate([lp['bq'], lp['bk'], lp['bv']], axis=1).astype(f32)  # (1, 3D)
    scale = 1.0 / math.sqrt(D // nhead)

    # (x+pos)@Wqk == x@Wqk + pos@Wqk; pos and Wqk are layer-invariant, so
    # pos@Wqk is computed ONCE here and reused by every layer's QKV kernel.
    pos_qk = linear(pos2d, wqk, jnp.zeros((1, 2 * D), f32), out_dtype=cd,
                    tm_cap=row_block,
                    vmem_limit_bytes=vmem_limit_bytes).reshape(B, S, 2 * D)

    lw = dict(
        wo=lp['wo'].astype(cd), bo=lp['bo'].astype(f32),
        g1=lp['g1'].astype(f32), be1=lp['be1'].astype(f32),
        w1=lp['w1'].astype(cd), b1=lp['b1'].astype(f32),
        w2=lp['w2'].astype(cd), b2=lp['b2'].astype(f32),
        g2=lp['g2'].astype(f32), be2=lp['be2'].astype(f32),
    )

    out3d = out2d.reshape(B, S, D)
    for _ in range(nlayer):
        q3, kT3, v3 = qkv_proj(out3d, pos_qk, wqkv, bqkv, scale=scale,
                               row_block=qkv_row_block,
                               vmem_limit_bytes=vmem_limit_bytes)
        attn = attention(q3, kT3, v3, bias, nhead,
                         q_block=q_block, kv_block=kv_block,
                         vmem_limit_bytes=vmem_limit_bytes)
        out2d = post_attn_ffn(attn.reshape(B * S, D), out3d.reshape(B * S, D),
                              lw, row_block=row_block,
                              vmem_limit_bytes=vmem_limit_bytes)
        out3d = out2d.reshape(B, S, D)

    return out3d.astype(src.dtype), mask_flat, pos_flat


# ----------------------------------------------------------------------------
# Pure-JAX reference (f32, for correctness check)
# ----------------------------------------------------------------------------

def _ln_ref(y, g, b, eps=1e-5):
    mean = jnp.mean(y, axis=-1, keepdims=True)
    var = jnp.mean((y - mean) ** 2, axis=-1, keepdims=True)
    return (y - mean) * jax.lax.rsqrt(var + eps) * g + b


def ref_forward(src, mask, pos, params, nhead, nlayer):
    B, C, H, W = src.shape
    S = H * W
    x = jnp.transpose(src, (0, 2, 3, 1)).reshape(B, S, C)
    out = x @ params['proj_w'] + params['proj_b'][0]
    D = out.shape[-1]
    Dh = D // nhead
    mask_flat = mask.reshape(B, S)
    pos_flat = jnp.transpose(pos, (0, 2, 3, 1)).reshape(B, S, D)
    bias = jnp.where(mask_flat, -1e30, 0.0)[:, None, None, :]
    lp = params['layer']
    for _ in range(nlayer):
        qk = out + pos_flat
        q = (qk @ lp['wq'] + lp['bq'][0]).reshape(B, S, nhead, Dh).transpose(0, 2, 1, 3)
        k = (qk @ lp['wk'] + lp['bk'][0]).reshape(B, S, nhead, Dh).transpose(0, 2, 1, 3)
        v = (out @ lp['wv'] + lp['bv'][0]).reshape(B, S, nhead, Dh).transpose(0, 2, 1, 3)
        s = jnp.einsum('bhqd,bhkd->bhqk', q, k) / math.sqrt(Dh) + bias
        p = jax.nn.softmax(s, axis=-1)
        a = jnp.einsum('bhqk,bhkd->bhqd', p, v).transpose(0, 2, 1, 3).reshape(B, S, D)
        a = a @ lp['wo'] + lp['bo'][0]
        h = _ln_ref(out + a, lp['g1'][0], lp['be1'][0])
        f = jnp.maximum(h @ lp['w1'] + lp['b1'][0], 0.0) @ lp['w2'] + lp['b2'][0]
        out = _ln_ref(h + f, lp['g2'][0], lp['be2'][0])
    return out, mask_flat, pos_flat


# ----------------------------------------------------------------------------
# Parameter construction (deterministic, synthetic)
# ----------------------------------------------------------------------------

def make_params(key, num_channels, hidden_dim, d_ffn):
    ks = jax.random.split(key, 16)
    sd = 0.05
    n = lambda k, shape: (sd * jax.random.normal(k, shape)).astype(jnp.float32)
    layer = dict(
        wq=n(ks[0], (hidden_dim, hidden_dim)), bq=n(ks[1], (1, hidden_dim)),
        wk=n(ks[2], (hidden_dim, hidden_dim)), bk=n(ks[3], (1, hidden_dim)),
        wv=n(ks[4], (hidden_dim, hidden_dim)), bv=n(ks[5], (1, hidden_dim)),
        wo=n(ks[6], (hidden_dim, hidden_dim)), bo=n(ks[7], (1, hidden_dim)),
        w1=n(ks[8], (hidden_dim, d_ffn)),      b1=n(ks[9], (1, d_ffn)),
        w2=n(ks[10], (d_ffn, hidden_dim)),     b2=n(ks[11], (1, hidden_dim)),
        g1=jnp.ones((1, hidden_dim), jnp.float32), be1=jnp.zeros((1, hidden_dim), jnp.float32),
        g2=jnp.ones((1, hidden_dim), jnp.float32), be2=jnp.zeros((1, hidden_dim), jnp.float32),
    )
    return dict(
        proj_w=n(ks[12], (num_channels, hidden_dim)),   # conv1x1 weight, transposed
        proj_b=n(ks[13], (1, hidden_dim)),
        layer=layer,
    )


# ----------------------------------------------------------------------------
# main
# ----------------------------------------------------------------------------

if __name__ == "__main__":
    # small shapes consistent with the module: 4-channel 16x16 feature map -> S=256
    B, C, H, W = 2, 4, 16, 16
    hidden_dim, nhead, nlayer, d_ffn = 32, 8, 2, 64

    key = jax.random.PRNGKey(0)
    k_src, k_pos, k_par = jax.random.split(key, 3)

    # TODO(synk): the CNN backbone + NestedTensor construction are external to this
    # module's hot path; we feed its outputs (src, mask, pos) directly as inputs.
    src = jax.random.normal(k_src, (B, C, H, W), dtype=jnp.float32)
    pos = jax.random.normal(k_pos, (B, hidden_dim, H, W), dtype=jnp.float32)
    mask = jnp.zeros((B, H, W), dtype=bool)
    mask = mask.at[1, :, W - 1].set(True)     # pad last column of batch 1

    params = make_params(k_par, C, hidden_dim, d_ffn)
    ref_out, ref_mask, ref_pos = ref_forward(src, mask, pos, params, nhead, nlayer)

    # Small block sizes so the demo exercises multi-tile grids (row tiles, and
    # 2x2 flash q/kv tiles with cross-tile online-softmax accumulation).
    kw = dict(row_block=128, qkv_row_block=128, q_block=128, kv_block=128)

    # 1) production-style bf16 matmul path (loose tolerance: bf16 + approx rcp)
    out_bf16, mask_flat, pos_flat = vision_encoder_forward(
        src, mask, pos, params, nhead, nlayer,
        compute_dtype=jnp.bfloat16, **kw)
    out_bf16 = jax.block_until_ready(out_bf16)

    # 2) f32 path through the same kernels (tight correctness check)
    out_f32, _, _ = vision_encoder_forward(
        src, mask, pos, params, nhead, nlayer,
        compute_dtype=jnp.float32, **kw)
    out_f32 = jax.block_until_ready(out_f32)

    assert out_bf16.shape == (B, H * W, hidden_dim)
    assert mask_flat.shape == (B, H * W)
    assert pos_flat.shape == (B, H * W, hidden_dim)

    err32 = float(jnp.max(jnp.abs(out_f32.astype(jnp.float32) - ref_out)))
    assert err32 < 2e-2, err32
    err16 = float(jnp.max(jnp.abs(out_bf16.astype(jnp.float32) - ref_out)))
    assert err16 < 2e-1, err16
    assert jnp.array_equal(mask_flat, ref_mask)
    assert jnp.allclose(pos_flat, ref_pos)

    print("KERNEL_OK")
</pallas_src>

<mosaic_0001>
module attributes {stable_mosaic.version = 11 : i64} {
  func.func @_matmul_kernel(%arg0: i32, %arg1: i32, %arg2: i32, %arg3: memref<128x4xbf16, #tpu.memory_space<vmem>>, %arg4: memref<4x32xbf16, #tpu.memory_space<vmem>>, %arg5: memref<1x32xf32, #tpu.memory_space<vmem>>, %arg6: memref<128x32xbf16, #tpu.memory_space<vmem>>, %arg7: memref<128x32xf32, #tpu.memory_space<vmem>>) attributes {dimension_semantics = [#tpu.dimension_semantics<parallel>, #tpu.dimension_semantics<parallel>, #tpu.dimension_semantics<arbitrary>], iteration_bounds = array<i64: 4, 1, 1>, scalar_prefetch = 0 : i64, scratch_operands = 1 : i64, tpu.core_type = #tpu.core_type<tc>, window_params = [{transform_indices = @transform_0, window_bounds = array<i64: 128, 4>}, {transform_indices = @transform_1, window_bounds = array<i64: 4, 32>}, {transform_indices = @transform_2, window_bounds = array<i64: 1, 32>}, {transform_indices = @transform_3, window_bounds = array<i64: 128, 32>}]} {
    %c0_i32 = arith.constant 0 : i32
    %0 = arith.cmpi eq, %arg2, %c0_i32 : i32
    %1 = arith.extui %0 : i1 to i32
    %c0_i32_0 = arith.constant 0 : i32
    %2 = arith.cmpi ne, %1, %c0_i32_0 : i32
    scf.if %2 {
      %cst_10 = arith.constant 0.000000e+00 : f32
      %12 = vector.broadcast %cst_10 : f32 to vector<128x32xf32>
      %c0_11 = arith.constant 0 : index
      %c0_12 = arith.constant 0 : index
      %13 = vector.load %arg7[%c0_11, %c0_12] : memref<128x32xf32, #tpu.memory_space<vmem>>, vector<128x32xf32>
      tpu.vector_store %arg7[%c0_11, %c0_12], %12 {strides = array<i32>} : memref<128x32xf32, #tpu.memory_space<vmem>>, vector<128x32xf32>,
    } else {
    }
    %c0 = arith.constant 0 : index
    %c0_1 = arith.constant 0 : index
    %3 = vector.load %arg7[%c0, %c0_1] : memref<128x32xf32, #tpu.memory_space<vmem>>, vector<128x32xf32>
    %c0_2 = arith.constant 0 : index
    %c0_3 = arith.constant 0 : index
    %4 = vector.load %arg3[%c0_2, %c0_3] : memref<128x4xbf16, #tpu.memory_space<vmem>>, vector<128x4xbf16>
    %c0_4 = arith.constant 0 : index
    %c0_5 = arith.constant 0 : index
    %5 = vector.load %arg4[%c0_4, %c0_5] : memref<4x32xbf16, #tpu.memory_space<vmem>>, vector<4x32xbf16>
    %cst = arith.constant dense<0.000000e+00> : vector<128x32xf32>
    %6 = tpu.matmul %4, %5, %cst {dimension_numbers = #tpu.dot_dimension_numbers<[1], [0], [0], [1], [0, 0, 1, 1], [], []>} : vector<128x4xbf16>, vector<4x32xbf16>, vector<128x32xf32> -> vector<128x32xf32>
    %7 = arith.addf %3, %6 : vector<128x32xf32>
    %c0_6 = arith.constant 0 : index
    %c0_7 = arith.constant 0 : index
    %8 = vector.load %arg7[%c0_6, %c0_7] : memref<128x32xf32, #tpu.memory_space<vmem>>, vector<128x32xf32>
    tpu.vector_store %arg7[%c0_6, %c0_7], %7 {strides = array<i32>} : memref<128x32xf32, #tpu.memory_space<vmem>>, vector<128x32xf32>,
    %c0_i32_8 = arith.constant 0 : i32
    %9 = arith.cmpi eq, %arg2, %c0_i32_8 : i32
    %10 = arith.extui %9 : i1 to i32
    %c0_i32_9 = arith.constant 0 : i32
    %11 = arith.cmpi ne, %10, %c0_i32_9 : i32
    scf.if %11 {
      %c0_10 = arith.constant 0 : index
      %c0_11 = arith.constant 0 : index
      %12 = vector.load %arg7[%c0_10, %c0_11] : memref<128x32xf32, #tpu.memory_space<vmem>>, vector<128x32xf32>
      %c0_12 = arith.constant 0 : index
      %c0_13 = arith.constant 0 : index
      %13 = vector.load %arg5[%c0_12, %c0_13] : memref<1x32xf32, #tpu.memory_space<vmem>>, vector<1x32xf32>
      %14 = vector.broadcast %13 : vector<1x32xf32> to vector<128x32xf32>
      %15 = arith.addf %12, %14 : vector<128x32xf32>
      %16 = arith.truncf %15 : vector<128x32xf32> to vector<128x32xbf16>
      %c0_14 = arith.constant 0 : index
      %c0_15 = arith.constant 0 : index
      %17 = vector.load %arg6[%c0_14, %c0_15] : memref<128x32xbf16, #tpu.memory_space<vmem>>, vector<128x32xbf16>
      tpu.vector_store %arg6[%c0_14, %c0_15], %16 {strides = array<i32>} : memref<128x32xbf16, #tpu.memory_space<vmem>>, vector<128x32xbf16>,
    } else {
    }
    return
  }
  func.func @transform_0(%arg0: i32, %arg1: i32, %arg2: i32) -> (i32, i32) {
    %c0_i32 = arith.constant 0 : i32
    return %arg0, %arg2 : i32, i32
  }
  func.func @transform_1(%arg0: i32, %arg1: i32, %arg2: i32) -> (i32, i32) {
    %c0_i32 = arith.constant 0 : i32
    return %arg2, %arg1 : i32, i32
  }
  func.func @transform_2(%arg0: i32, %arg1: i32, %arg2: i32) -> (i32, i32) {
    %c0_i32 = arith.constant 0 : i32
    %c0_i32_0 = arith.constant 0 : i32
    return %c0_i32, %arg1 : i32, i32
  }
  func.func @transform_3(%arg0: i32, %arg1: i32, %arg2: i32) -> (i32, i32) {
    %c0_i32 = arith.constant 0 : i32
    return %arg0, %arg1 : i32, i32
  }
}

</mosaic_0001>

<llo_original>
// kernel: tpu_custom_call.1
$region0: #{tpu_custom_call.1}
  #allocation0 [shape = 'u32[]', space=smem, size = 0x4, offset = 0x4, fixed_abs, tag = 'smem constant byte address 0x4 - core index']
  #allocation1 [shape = 'u32[144,128]{1,0:T(1,128)}', space=vmem, size = 0x12000, scoped, tag = 'internal scratch']
  #allocation2 [shape = 'f32[128,32]{1,0:T(8,128)}', space=vmem, size = 0x10000, scoped, tag = 'scratch operand']
  %s0 = inlined_call_operand.vmem [shape: bf16[512,4], index: 0, kind: input, shape index: {}]
  %s1 = inlined_call_operand.vmem [shape: bf16[4,32], index: 1, kind: input, shape index: {}]
  %s2 = inlined_call_operand.vmem [shape: f32[1,32], index: 2, kind: input, shape index: {}]
  %s3 = inlined_call_operand.vmem [shape: bf16[512,32], index: 3, kind: output, shape index: {}]
  %s4 = sld [smem:[#allocation0]]
  $region53: #{tpu_custom_call.1} parent=0
    _
  %s6 = ssub.s32 1, %s4
  %s7 = scalar_select 0, %s6, %s4
  loop: start=0, step=1, limit=6
  $region2: #{tpu_custom_call.1} parent=0 // loop_pre_header
    _
  $region3: #{tpu_custom_call.1} parent=0 // loop_header
    %s9 = sphi 0, %s13
    %p10 = scmp.ge.s32.totalorder %s9, 6
    %s16 = sphi 0, %s35
    %s17 = sphi 0, %s31
    %s18 = sphi 0, %s27
    %s19 = sphi 0, %s16
    %s20 = sphi 0, %s17
    %s21 = sphi 0, %s18
    %s22 = sphi 0, %s19
    %s23 = sphi 0, %s20
    %s24 = sphi 0, %s21
    %s40 = sphi 0, %s42
    %s43 = sphi 0, %s40
    %s44 = sphi 0, %s43
    %s60 = sphi 0, %s44
    %s68 = sphi 0, %s70
    %s71 = sphi 0, %s68
    %s72 = sphi 0, %s71
    %s88 = sphi 0, %s72
    %s94 = sphi 0, %s96
    %s97 = sphi 0, %s94
    %s98 = sphi 0, %s97
    %s114 = sphi 0, %s98
    %s122 = sphi 0, %s124
    %s125 = sphi 0, %s122
    %s126 = sphi 0, %s125
    %s142 = sphi 0, %s126
  $region4: #{tpu_custom_call.1} parent=0 // loop_header_branch
    %12 = sbr.rel (%p10) target = $region8
  $region5: #{tpu_custom_call.1} parent=0 // loop_body
    %s14 = ssub.s32 %s9, 1
    %s15 = ssub.s32 %s9, 2
    %s25 = sadd.s32 1, %s18
    %p26 = scmp.ge.s32.totalorder %s25, 1
    %s27 = scalar_select %p26, 0, %s25
    %s28 = sadd.s32 1, %s17
    %s29 = scalar_select %p26, %s28, %s17
    %p30 = scmp.ge.s32.totalorder %s29, 1
    %s31 = scalar_select %p30, 0, %s29
    %s32 = sadd.s32 1, %s16
    %s33 = scalar_select %p30, %s32, %s16
    %p34 = scmp.ge.s32.totalorder %s33, 4
    %s35 = scalar_select %p34, 0, %s33
    %s36 = ssub.s32 %s16, %s35
    %s37 = ssub.s32 %s18, %s27
    %s38 = sor.u32 %s36, %s37
    %p39 = scmp.eq.s32.totalorder %s38, 0
    %s41 = sadd.s32 %s40, 1
    %s42 = scalar_select %p39, %s40, %s41
    %p45 = pneg %p39
    %p46 = scmp.eq.s32.totalorder %s9, 3
    %p47 = por %p45, %p46
    %p48 = scmp.ne.s32.totalorder %s40, %s43
    %p49 = scmp.eq.s32.totalorder %s9, 0
    %p50 = por %p48, %p49
    %p51 = scmp.ne.s32.totalorder %s40, %s43
    %p52 = scmp.eq.s32.totalorder %s14, 3
    %p53 = por %p51, %p52
    %p54 = scmp.ne.s32.totalorder %s43, %s44
    %p55 = scmp.eq.s32.totalorder %s14, 0
    %p56 = por %p54, %p55
    %p57 = scmp.ne.s32.totalorder %s43, %s44
    %p58 = scmp.eq.s32.totalorder %s15, 3
    %p59 = por %p57, %p58
    %p61 = scmp.ne.s32.totalorder %s44, %s60
    %p62 = scmp.eq.s32.totalorder %s15, 0
    %p63 = por %p61, %p62
    %s64 = ssub.s32 %s18, %s27
    %s65 = ssub.s32 %s17, %s31
    %s66 = sor.u32 %s64, %s65
    %p67 = scmp.eq.s32.totalorder %s66, 0
    %s69 = sadd.s32 %s68, 1
    %s70 = scalar_select %p67, %s68, %s69
    %p73 = pneg %p67
    %p74 = scmp.eq.s32.totalorder %s9, 3
    %p75 = por %p73, %p74
    %p76 = scmp.ne.s32.totalorder %s68, %s71
    %p77 = scmp.eq.s32.totalorder %s9, 0
    %p78 = por %p76, %p77
    %p79 = scmp.ne.s32.totalorder %s68, %s71
    %p80 = scmp.eq.s32.totalorder %s14, 3
    %p81 = por %p79, %p80
    %p82 = scmp.ne.s32.totalorder %s71, %s72
    %p83 = scmp.eq.s32.totalorder %s14, 0
    %p84 = por %p82, %p83
    %p85 = scmp.ne.s32.totalorder %s71, %s72
    %p86 = scmp.eq.s32.totalorder %s15, 3
    %p87 = por %p85, %p86
    %p89 = scmp.ne.s32.totalorder %s72, %s88
    %p90 = scmp.eq.s32.totalorder %s15, 0
    %p91 = por %p89, %p90
    %s92 = ssub.s32 %s17, %s31
    %p93 = scmp.eq.s32.totalorder %s92, 0
    %s95 = sadd.s32 %s94, 1
    %s96 = scalar_select %p93, %s94, %s95
    %p99 = pneg %p93
    %p100 = scmp.eq.s32.totalorder %s9, 3
    %p101 = por %p99, %p100
    %p102 = scmp.ne.s32.totalorder %s94, %s97
    %p103 = scmp.eq.s32.totalorder %s9, 0
    %p104 = por %p102, %p103
    %p105 = scmp.ne.s32.totalorder %s94, %s97
    %p106 = scmp.eq.s32.totalorder %s14, 3
    %p107 = por %p105, %p106
    %p108 = scmp.ne.s32.totalorder %s97, %s98
    %p109 = scmp.eq.s32.totalorder %s14, 0
    %p110 = por %p108, %p109
    %p111 = scmp.ne.s32.totalorder %s97, %s98
    %p112 = scmp.eq.s32.totalorder %s15, 3
    %p113 = por %p111, %p112
    %p115 = scmp.ne.s32.totalorder %s98, %s114
    %p116 = scmp.eq.s32.totalorder %s15, 0
    %p117 = por %p115, %p116
    %s118 = ssub.s32 %s16, %s35
    %s119 = ssub.s32 %s17, %s31
    %s120 = sor.u32 %s118, %s119
    %p121 = scmp.eq.s32.totalorder %s120, 0
    %s123 = sadd.s32 %s122, 1
    %s124 = scalar_select %p121, %s122, %s123
    %p127 = pneg %p121
    %p128 = scmp.eq.s32.totalorder %s9, 3
    %p129 = por %p127, %p128
    %p130 = scmp.ne.s32.totalorder %s122, %s125
    %p131 = scmp.eq.s32.totalorder %s9, 0
    %p132 = por %p130, %p131
    %p133 = scmp.ne.s32.totalorder %s122, %s125
    %p134 = scmp.eq.s32.totalorder %s14, 3
    %p135 = por %p133, %p134
    %p136 = scmp.ne.s32.totalorder %s125, %s126
    %p137 = scmp.eq.s32.totalorder %s14, 0
    %p138 = por %p136, %p137
    %p139 = scmp.ne.s32.totalorder %s125, %s126
    %p140 = scmp.eq.s32.totalorder %s15, 3
    %p141 = por %p139, %p140
    %p143 = scmp.ne.s32.totalorder %s126, %s142
    %p144 = scmp.eq.s32.totalorder %s15, 0
    %p145 = por %p143, %p144
    %p146 = scmp.le.s32.totalorder 1, %s9
    %p147 = scmp.lt.s32.totalorder %s9, 5
    %p148 = pnand %p146, %p147
    %p149 = pneg %p148
    // Predicated region
    $region9: #{tpu_custom_call.1} parent=5 // pred_check
      _
    $region10: #{tpu_custom_call.1} parent=5 // pred_check_branch
      %151 = sbr.rel (%p148) target = $region12
    $region11: #{tpu_custom_call.1} parent=5 // pred_region
      %s152 = ssub.s32 %s9, 1
      // Predicated region
      $region13: #{tpu_custom_call.1} parent=11 // pred_check
        %p153 = pneg %p84
      $region14: #{tpu_custom_call.1} parent=11 // pred_check_branch
        %155 = sbr.rel (%p153) target = $region16
      $region15: #{tpu_custom_call.1} parent=11 // pred_region
        %p156 = scmp.lt.s32.totalorder %s21, 0
        %s157 = scalar_select %p156, %s21, 0
        %p158 = scmp.lt.s32.totalorder %s20, 0
        %s159 = scalar_select %p158, %s20, 0
        %s160 = sadd.s32 %s159, %s157
        %s161 = smul.addr %s160, 2
        %s162 = scalar_lea.vmem %s1, %s161
      $region16: #{tpu_custom_call.1} parent=11 // pred_fallthru
        _
      // Predicated region
      $region17: #{tpu_custom_call.1} parent=11 // pred_check
        %p163 = pneg %p110
      $region18: #{tpu_custom_call.1} parent=11 // pred_check_branch
        %165 = sbr.rel (%p163) target = $region20
      $region19: #{tpu_custom_call.1} parent=11 // pred_region
        %p166 = scmp.lt.s32.totalorder %s20, 0
        %s167 = scalar_select %p166, %s20, 0
        %s168 = scalar_lea.vmem %s2, %s167
      $region20: #{tpu_custom_call.1} parent=11 // pred_fallthru
        _
    $region12: #{tpu_custom_call.1} parent=5 // pred_fallthru
      _
    %p169 = scmp.lt.s32.totalorder %s9, 4
    // Predicated region
    $region21: #{tpu_custom_call.1} parent=5 // pred_check
      %p170 = pneg %p169
    $region22: #{tpu_custom_call.1} parent=5 // pred_check_branch
      %172 = sbr.rel (%p170) target = $region24
    $region23: #{tpu_custom_call.1} parent=5 // pred_region
      // Predicated region
      $region25: #{tpu_custom_call.1} parent=23 // pred_check
        %p173 = pneg %p50
      $region26: #{tpu_custom_call.1} parent=23 // pred_check_branch
        %175 = sbr.rel (%p173) target = $region28
      $region27: #{tpu_custom_call.1} parent=23 // pred_region
        %s176 = smul.u32 16, %s16
        %p177 = scmp.lt.s32.totalorder %s176, 63
        %s178 = scalar_select %p177, %s176, 63
        %p179 = scmp.lt.s32.totalorder %s18, 0
        %s180 = scalar_select %p179, %s18, 0
        %s181 = sadd.s32 %s180, %s178
        %s182 = smul.addr %s181, 4
        %s183 = scalar_lea.vmem %s0, %s182
        %s184 = smul.u32 16, %s16
      $region28: #{tpu_custom_call.1} parent=23 // pred_fallthru
        _
    $region24: #{tpu_custom_call.1} parent=5 // pred_fallthru
      _
    %p185 = scmp.le.s32.totalorder 1, %s9
    %p186 = scmp.lt.s32.totalorder %s9, 5
    %p187 = pnand %p185, %p186
    %p188 = pneg %p187
    // Predicated region
    $region29: #{tpu_custom_call.1} parent=5 // pred_check
      _
    $region30: #{tpu_custom_call.1} parent=5 // pred_check_branch
      %190 = sbr.rel (%p187) target = $region32
    $region31: #{tpu_custom_call.1} parent=5 // pred_region
      %s191 = ssub.s32 %s9, 1
      %s192 = smul.u32 16, %s19
      %p193 = scmp.lt.s32.totalorder %s192, 63
      %s194 = scalar_select %p193, %s192, 63
      %p195 = scmp.lt.s32.totalorder %s21, 0
      %s196 = scalar_select %p195, %s21, 0
      %s197 = sadd.s32 %s196, %s194
      %s198 = smul.addr %s197, 4
      %s199 = scalar_lea.vmem %s0, %s198
      %p200 = pneg %p56
      %p201 = pneg %p53
      %p202 = scmp.lt.s32.totalorder %s21, 0
      %s203 = scalar_select %p202, %s21, 0
      %p204 = scmp.lt.s32.totalorder %s20, 0
      %s205 = scalar_select %p204, %s20, 0
      %s206 = sadd.s32 %s205, %s203
      %s207 = smul.addr %s206, 2
      %s208 = scalar_lea.vmem %s1, %s207
      %p209 = pneg %p84
      %p210 = pneg %p81
      %p211 = scmp.lt.s32.totalorder %s20, 0
      %s212 = scalar_select %p211, %s20, 0
      %s213 = scalar_lea.vmem %s2, %s212
      %p214 = pneg %p110
      %p215 = pneg %p107
      %p216 = pneg %p138
      %p217 = pneg %p135
      %s218 = smul.u32 16, %s19
      %p219 = scmp.lt.s32.totalorder %s218, 63
      %s220 = scalar_select %p219, %s218, 63
      %p221 = scmp.lt.s32.totalorder %s20, 0
      %s222 = scalar_select %p221, %s20, 0
      %s223 = sadd.s32 %s222, %s220
      %s224 = smul.addr %s223, 4
      %s225 = scalar_lea.vmem %s3, %s224
      %s226 = smul.u32 16, %s19
      %p227 = scmp.lt.s32.totalorder %s226, 63
      %s228 = scalar_select %p227, %s226, 63
      %p229 = scmp.lt.s32.totalorder %s21, 0
      %s230 = scalar_select %p229, %s21, 0
      %s231 = sadd.s32 %s230, %s228
      %s232 = smul.addr %s231, 4
      %s233 = scalar_lea.vmem %s0, %s232
      %s234 = smul.u32 16, %s19
      %p235 = scmp.lt.s32.totalorder %s21, 0
      %s236 = scalar_select %p235, %s21, 0
      %p237 = scmp.lt.s32.totalorder %s20, 0
      %s238 = scalar_select %p237, %s20, 0
      %s239 = sadd.s32 %s238, %s236
      %s240 = smul.addr %s239, 2
      %s241 = scalar_lea.vmem %s1, %s240
      %p242 = scmp.lt.s32.totalorder %s20, 0
      %s243 = scalar_select %p242, %s20, 0
      %s244 = scalar_lea.vmem %s2, %s243
      %s245 = smul.u32 16, %s19
      %p246 = scmp.lt.s32.totalorder %s245, 63
      %s247 = scalar_select %p246, %s245, 63
      %p248 = scmp.lt.s32.totalorder %s20, 0
      %s249 = scalar_select %p248, %s20, 0
      %s250 = sadd.s32 %s249, %s247
      %s251 = smul.addr %s250, 4
      %s252 = scalar_lea.vmem %s3, %s251
      %s253 = smul.u32 16, %s19
      %p255 = scmp.eq.s32.totalorder %s21, 0
      // Predicated region
      $region33: #{tpu_custom_call.1} parent=31 // pred_check
        %p256 = pneg %p255
      $region34: #{tpu_custom_call.1} parent=31 // pred_check_branch
        %258 = sbr.rel (%p256) target = $region36
      $region35: #{tpu_custom_call.1} parent=31 // pred_region
        %vm259 = vcmask 261120
        %260 = vst.msk [vmem:[#allocation2] sm:$0xff] %vm259, 0.0
        %261 = vst.msk [vmem:[#allocation2 + $0x8] sm:$0xff] %vm259, 0.0
        %262 = vst.msk [vmem:[#allocation2 + $0x10] sm:$0xff] %vm259, 0.0
        %263 = vst.msk [vmem:[#allocation2 + $0x18] sm:$0xff] %vm259, 0.0
        %264 = vst.msk [vmem:[#allocation2 + $0x20] sm:$0xff] %vm259, 0.0
        %265 = vst.msk [vmem:[#allocation2 + $0x28] sm:$0xff] %vm259, 0.0
        %266 = vst.msk [vmem:[#allocation2 + $0x30] sm:$0xff] %vm259, 0.0
        %267 = vst.msk [vmem:[#allocation2 + $0x38] sm:$0xff] %vm259, 0.0
        %268 = vst.msk [vmem:[#allocation2 + $0x40] sm:$0xff] %vm259, 0.0
        %269 = vst.msk [vmem:[#allocation2 + $0x48] sm:$0xff] %vm259, 0.0
        %270 = vst.msk [vmem:[#allocation2 + $0x50] sm:$0xff] %vm259, 0.0
        %271 = vst.msk [vmem:[#allocation2 + $0x58] sm:$0xff] %vm259, 0.0
        %272 = vst.msk [vmem:[#allocation2 + $0x60] sm:$0xff] %vm259, 0.0
        %273 = vst.msk [vmem:[#allocation2 + $0x68] sm:$0xff] %vm259, 0.0
        %274 = vst.msk [vmem:[#allocation2 + $0x70] sm:$0xff] %vm259, 0.0
        %275 = vst.msk [vmem:[#allocation2 + $0x78] sm:$0xff] %vm259, 0.0
      $region36: #{tpu_custom_call.1} parent=31 // pred_fallthru
        _
      %v276 = vld [vmem:[#allocation2] sm:$0xff]
      %v277 = vld [vmem:[#allocation2 + $0x8] sm:$0xff]
      %v278 = vld [vmem:[#allocation2 + $0x10] sm:$0xff]
      %v279 = vld [vmem:[#allocation2 + $0x18] sm:$0xff]
      %v280 = vld [vmem:[#allocation2 + $0x20] sm:$0xff]
      %v281 = vld [vmem:[#allocation2 + $0x28] sm:$0xff]
      %v282 = vld [vmem:[#allocation2 + $0x30] sm:$0xff]
      %v283 = vld [vmem:[#allocation2 + $0x38] sm:$0xff]
      %v284 = vld [vmem:[#allocation2 + $0x40] sm:$0xff]
      %v285 = vld [vmem:[#allocation2 + $0x48] sm:$0xff]
      %v286 = vld [vmem:[#allocation2 + $0x50] sm:$0xff]
      %v287 = vld [vmem:[#allocation2 + $0x58] sm:$0xff]
      %v288 = vld [vmem:[#allocation2 + $0x60] sm:$0xff]
      %v289 = vld [vmem:[#allocation2 + $0x68] sm:$0xff]
      %v290 = vld [vmem:[#allocation2 + $0x70] sm:$0xff]
      %v291 = vld [vmem:[#allocation2 + $0x78] sm:$0xff]
      %v292 = vld [vmem:[%s233] sm:$0xf]
      %v293 = vld [vmem:[%s233 + $0x4] sm:$0xf]
      %v294 = vld [vmem:[%s233 + $0x8] sm:$0xf]
      %v295 = vld [vmem:[%s233 + $0xc] sm:$0xf]
      %v296 = vld [vmem:[%s233 + $0x10] sm:$0xf]
      %v297 = vld [vmem:[%s233 + $0x14] sm:$0xf]
      %v298 = vld [vmem:[%s233 + $0x18] sm:$0xf]
      %v299 = vld [vmem:[%s233 + $0x1c] sm:$0xf]
      %v300 = vld [vmem:[%s233 + $0x20] sm:$0xf]
      %v301 = vld [vmem:[%s233 + $0x24] sm:$0xf]
      %v302 = vld [vmem:[%s233 + $0x28] sm:$0xf]
      %v303 = vld [vmem:[%s233 + $0x2c] sm:$0xf]
      %v304 = vld [vmem:[%s233 + $0x30] sm:$0xf]
      %v305 = vld [vmem:[%s233 + $0x34] sm:$0xf]
      %v306 = vld [vmem:[%s233 + $0x38] sm:$0xf]
      %v307 = vld [vmem:[%s233 + $0x3c] sm:$0xf]
      %v308 = vld [vmem:[%s241] sm:$0x3]
      %v325 = vunpack.c.l.b16 %v292
      %v326 = vunpack.c.l.b16 %v293
      %v327 = vunpack.c.l.b16 %v294
      %v328 = vunpack.c.l.b16 %v295
      %v329 = vunpack.c.l.b16 %v296
      %v330 = vunpack.c.l.b16 %v297
      %v331 = vunpack.c.l.b16 %v298
      %v332 = vunpack.c.l.b16 %v299
      %v333 = vunpack.c.l.b16 %v300
      %v334 = vunpack.c.l.b16 %v301
      %v335 = vunpack.c.l.b16 %v302
      %v336 = vunpack.c.l.b16 %v303
      %v337 = vunpack.c.l.b16 %v304
      %v338 = vunpack.c.l.b16 %v305
      %v339 = vunpack.c.l.b16 %v306
      %v340 = vunpack.c.l.b16 %v307
      %v341 = vpack.c.b16 %v326, %v325
      %v342 = vpack.c.b16 %v328, %v327
      %v343 = vpack.c.b16 %v330, %v329
      %v344 = vpack.c.b16 %v332, %v331
      %v345 = vpack.c.b16 %v334, %v333
      %v346 = vpack.c.b16 %v336, %v335
      %v347 = vpack.c.b16 %v338, %v337
      %v348 = vpack.c.b16 %v340, %v339
      %vm349 = vcmask 31744
      %v351 = vsel %vm349, %v341, 0
      %v354 = vsel %vm349, %v342, 0
      %v357 = vsel %vm349, %v343, 0
      %v360 = vsel %vm349, %v344, 0
      %v363 = vsel %vm349, %v345, 0
      %v366 = vsel %vm349, %v346, 0
      %v369 = vsel %vm349, %v347, 0
      %v372 = vsel %vm349, %v348, 0
      %vm374 = vcmask 1041408
      %v376 = vsel %vm374, %v308, 0
      %378 = vmatprep.subr.bf16.mxu0 0
      %379 = vmatpush1.bf16.msra.mxu0 %v376
      %380 = vmatprep.subr.bf16.mxu0 0
      %381 = vmatpush1.bf16.msra.mxu0 0
      %382 = vmatprep.subr.bf16.mxu0 0
      %383 = vmatpush1.bf16.msra.mxu0 0
      %384 = vmatprep.subr.bf16.mxu0 0
      %385 = vmatpush1.bf16.msra.mxu0 0
      %386 = vmatprep.subr.bf16.mxu0 0
      %387 = vmatpush1.bf16.msra.mxu0 0
      %388 = vmatprep.subr.bf16.mxu0 0
      %389 = vmatpush1.bf16.msra.mxu0 0
      %390 = vmatprep.subr.bf16.mxu0 0
      %391 = vmatpush1.bf16.msra.mxu0 0
      %392 = vmatprep.subr.bf16.mxu0 0
      %393 = vmatpush1.bf16.msra.mxu0 0
      %394 = vmatprep.subr.bf16.mxu0 0
      %395 = vmatpush1.bf16.msra.mxu0 0
      %396 = vmatprep.subr.bf16.mxu0 0
      %397 = vmatpush1.bf16.msra.mxu0 0
      %398 = vmatprep.subr.bf16.mxu0 0
      %399 = vmatpush1.bf16.msra.mxu0 0
      %400 = vmatprep.subr.bf16.mxu0 0
      %401 = vmatpush1.bf16.msra.mxu0 0
      %402 = vmatprep.subr.bf16.mxu0 0
      %403 = vmatpush1.bf16.msra.mxu0 0
      %404 = vmatprep.subr.bf16.mxu0 0
      %405 = vmatpush1.bf16.msra.mxu0 0
      %406 = vmatprep.subr.bf16.mxu0 0
      %407 = vmatpush1.bf16.msra.mxu0 0
      %408 = vmatprep.subr.bf16.mxu0 0
      %409 = vmatpush1.bf16.msra.mxu0 0
      %410 = vmatprep.mubr.bf16.mxu0 0
      %411 = vmatmul.mubr.bf16.gmra.mrb[0].mxu0 %v351
      %v412 = vpop.f32.mrb[0].mxu0
      %v413 = vadd.f32 0.0, %v412
      %v414 = vpop.f32.mrb[0].mxu0
      %v415 = vpop.f32.mrb[0].mxu0
      %v416 = vadd.f32 0.0, %v415
      %v417 = vpop.f32.mrb[0].mxu0
      %418 = vmatprep.mubr.bf16.mxu0 0
      %419 = vmatmul.mubr.bf16.gmra.mrb[0].mxu0 %v354
      %v420 = vpop.f32.mrb[0].mxu0
      %v421 = vadd.f32 0.0, %v420
      %v422 = vpop.f32.mrb[0].mxu0
      %v423 = vpop.f32.mrb[0].mxu0
      %v424 = vadd.f32 0.0, %v423
      %v425 = vpop.f32.mrb[0].mxu0
      %426 = vmatprep.mubr.bf16.mxu0 0
      %427 = vmatmul.mubr.bf16.gmra.mrb[0].mxu0 %v357
      %v428 = vpop.f32.mrb[0].mxu0
      %v429 = vadd.f32 0.0, %v428
      %v430 = vpop.f32.mrb[0].mxu0
      %v431 = vpop.f32.mrb[0].mxu0
      %v432 = vadd.f32 0.0, %v431
      %v433 = vpop.f32.mrb[0].mxu0
      %434 = vmatprep.mubr.bf16.mxu0 0
      %435 = vmatmul.mubr.bf16.gmra.mrb[0].mxu0 %v360
      %v436 = vpop.f32.mrb[0].mxu0
      %v437 = vadd.f32 0.0, %v436
      %v438 = vpop.f32.mrb[0].mxu0
      %v439 = vpop.f32.mrb[0].mxu0
      %v440 = vadd.f32 0.0, %v439
      %v441 = vpop.f32.mrb[0].mxu0
      %442 = vmatprep.mubr.bf16.mxu0 0
      %443 = vmatmul.mubr.bf16.gmra.mrb[0].mxu0 %v363
      %v444 = vpop.f32.mrb[0].mxu0
      %v445 = vadd.f32 0.0, %v444
      %v446 = vpop.f32.mrb[0].mxu0
      %v447 = vpop.f32.mrb[0].mxu0
      %v448 = vadd.f32 0.0, %v447
      %v449 = vpop.f32.mrb[0].mxu0
      %450 = vmatprep.mubr.bf16.mxu0 0
      %451 = vmatmul.mubr.bf16.gmra.mrb[0].mxu0 %v366
      %v452 = vpop.f32.mrb[0].mxu0
      %v453 = vadd.f32 0.0, %v452
      %v454 = vpop.f32.mrb[0].mxu0
      %v455 = vpop.f32.mrb[0].mxu0
      %v456 = vadd.f32 0.0, %v455
      %v457 = vpop.f32.mrb[0].mxu0
      %458 = vmatprep.mubr.bf16.mxu0 0
      %459 = vmatmul.mubr.bf16.gmra.mrb[0].mxu0 %v369
      %v460 = vpop.f32.mrb[0].mxu0
      %v461 = vadd.f32 0.0, %v460
      %v462 = vpop.f32.mrb[0].mxu0
      %v463 = vpop.f32.mrb[0].mxu0
      %v464 = vadd.f32 0.0, %v463
      %v465 = vpop.f32.mrb[0].mxu0
      %466 = vmatprep.mubr.bf16.mxu0 0
      %467 = vmatmul.mubr.bf16.gmra.mrb[0].mxu0 %v372
      %v468 = vpop.f32.mrb[0].mxu0
      %v469 = vadd.f32 0.0, %v468
      %v470 = vpop.f32.mrb[0].mxu0
      %v471 = vpop.f32.mrb[0].mxu0
      %v472 = vadd.f32 0.0, %v471
      %v473 = vpop.f32.mrb[0].mxu0
      %474 = vdwg.mxu0
      %v475 = vadd.f32 %v276, %v413
      %v476 = vadd.f32 %v277, %v416
      %v477 = vadd.f32 %v278, %v421
      %v478 = vadd.f32 %v279, %v424
      %v479 = vadd.f32 %v280, %v429
      %v480 = vadd.f32 %v281, %v432
      %v481 = vadd.f32 %v282, %v437
      %v482 = vadd.f32 %v283, %v440
      %v483 = vadd.f32 %v284, %v445
      %v484 = vadd.f32 %v285, %v448
      %v485 = vadd.f32 %v286, %v453
      %v486 = vadd.f32 %v287, %v456
      %v487 = vadd.f32 %v288, %v461
      %v488 = vadd.f32 %v289, %v464
      %v489 = vadd.f32 %v290, %v469
      %v490 = vadd.f32 %v291, %v472
      %vm491 = vcmask 261120
      %492 = vst.msk [vmem:[#allocation2] sm:$0xff] %vm491, %v475
      %493 = vst.msk [vmem:[#allocation2 + $0x8] sm:$0xff] %vm491, %v476
      %494 = vst.msk [vmem:[#allocation2 + $0x10] sm:$0xff] %vm491, %v477
      %495 = vst.msk [vmem:[#allocation2 + $0x18] sm:$0xff] %vm491, %v478
      %496 = vst.msk [vmem:[#allocation2 + $0x20] sm:$0xff] %vm491, %v479
      %497 = vst.msk [vmem:[#allocation2 + $0x28] sm:$0xff] %vm491, %v480
      %498 = vst.msk [vmem:[#allocation2 + $0x30] sm:$0xff] %vm491, %v481
      %499 = vst.msk [vmem:[#allocation2 + $0x38] sm:$0xff] %vm491, %v482
      %500 = vst.msk [vmem:[#allocation2 + $0x40] sm:$0xff] %vm491, %v483
      %501 = vst.msk [vmem:[#allocation2 + $0x48] sm:$0xff] %vm491, %v484
      %502 = vst.msk [vmem:[#allocation2 + $0x50] sm:$0xff] %vm491, %v485
      %503 = vst.msk [vmem:[#allocation2 + $0x58] sm:$0xff] %vm491, %v486
      %504 = vst.msk [vmem:[#allocation2 + $0x60] sm:$0xff] %vm491, %v487
      %505 = vst.msk [vmem:[#allocation2 + $0x68] sm:$0xff] %vm491, %v488
      %506 = vst.msk [vmem:[#allocation2 + $0x70] sm:$0xff] %vm491, %v489
      %507 = vst.msk [vmem:[#allocation2 + $0x78] sm:$0xff] %vm491, %v490
      // Predicated region
      $region37: #{tpu_custom_call.1} parent=31 // pred_check
        %p508 = pneg %p255
      $region38: #{tpu_custom_call.1} parent=31 // pred_check_branch
        %510 = sbr.rel (%p508) target = $region40
      $region39: #{tpu_custom_call.1} parent=31 // pred_region
        %v511 = vld [vmem:[#allocation2] sm:$0xff]
        %v512 = vld [vmem:[#allocation2 + $0x8] sm:$0xff]
        %v513 = vld [vmem:[#allocation2 + $0x10] sm:$0xff]
        %v514 = vld [vmem:[#allocation2 + $0x18] sm:$0xff]
        %v515 = vld [vmem:[#allocation2 + $0x20] sm:$0xff]
        %v516 = vld [vmem:[#allocation2 + $0x28] sm:$0xff]
        %v517 = vld [vmem:[#allocation2 + $0x30] sm:$0xff]
        %v518 = vld [vmem:[#allocation2 + $0x38] sm:$0xff]
        %v519 = vld [vmem:[#allocation2 + $0x40] sm:$0xff]
        %v520 = vld [vmem:[#allocation2 + $0x48] sm:$0xff]
        %v521 = vld [vmem:[#allocation2 + $0x50] sm:$0xff]
        %v522 = vld [vmem:[#allocation2 + $0x58] sm:$0xff]
        %v523 = vld [vmem:[#allocation2 + $0x60] sm:$0xff]
        %v524 = vld [vmem:[#allocation2 + $0x68] sm:$0xff]
        %v525 = vld [vmem:[#allocation2 + $0x70] sm:$0xff]
        %v526 = vld [vmem:[#allocation2 + $0x78] sm:$0xff]
        %v527 = vld [vmem:[%s244] sm:$0x1]
        %v529 = vlaneseq
        %v530 = vshrl.u32 %v529, 7
        %v531 = vsub.s32 0, %v530
        %v532 = vrot.slane %v527, %v531
        %v534 = vadd.f32 %v511, %v532
        %v535 = vadd.f32 %v512, %v532
        %v536 = vadd.f32 %v513, %v532
        %v537 = vadd.f32 %v514, %v532
        %v538 = vadd.f32 %v515, %v532
        %v539 = vadd.f32 %v516, %v532
        %v540 = vadd.f32 %v517, %v532
        %v541 = vadd.f32 %v518, %v532
        %v542 = vadd.f32 %v519, %v532
        %v543 = vadd.f32 %v520, %v532
        %v544 = vadd.f32 %v521, %v532
        %v545 = vadd.f32 %v522, %v532
        %v546 = vadd.f32 %v523, %v532
        %v547 = vadd.f32 %v524, %v532
        %v548 = vadd.f32 %v525, %v532
        %v549 = vadd.f32 %v526, %v532
        %v550 = vpack.c.bf16 %v535, %v534
        %v551 = vpack.c.bf16 %v537, %v536
        %v552 = vpack.c.bf16 %v539, %v538
        %v553 = vpack.c.bf16 %v541, %v540
        %v554 = vpack.c.bf16 %v543, %v542
        %v555 = vpack.c.bf16 %v545, %v544
        %v556 = vpack.c.bf16 %v547, %v546
        %v557 = vpack.c.bf16 %v549, %v548
        %v566 = vunpack.c.l.b16 %v550
        %v567 = vunpack.c.h.b16 %v550
        %v568 = vunpack.c.l.b16 %v551
        %v569 = vunpack.c.h.b16 %v551
        %v570 = vunpack.c.l.b16 %v552
        %v571 = vunpack.c.h.b16 %v552
        %v572 = vunpack.c.l.b16 %v553
        %v573 = vunpack.c.h.b16 %v553
        %v574 = vunpack.c.l.b16 %v554
        %v575 = vunpack.c.h.b16 %v554
        %v576 = vunpack.c.l.b16 %v555
        %v577 = vunpack.c.h.b16 %v555
        %v578 = vunpack.c.l.b16 %v556
        %v579 = vunpack.c.h.b16 %v556
        %v580 = vunpack.c.l.b16 %v557
        %v581 = vunpack.c.h.b16 %v557
        %v582 = vpack.c.b16 %v566, %v566
        %v583 = vpack.c.b16 %v567, %v567
        %v584 = vpack.c.b16 %v568, %v568
        %v585 = vpack.c.b16 %v569, %v569
        %v586 = vpack.c.b16 %v570, %v570
        %v587 = vpack.c.b16 %v571, %v571
        %v588 = vpack.c.b16 %v572, %v572
        %v589 = vpack.c.b16 %v573, %v573
        %v590 = vpack.c.b16 %v574, %v574
        %v591 = vpack.c.b16 %v575, %v575
        %v592 = vpack.c.b16 %v576, %v576
        %v593 = vpack.c.b16 %v577, %v577
        %v594 = vpack.c.b16 %v578, %v578
        %v595 = vpack.c.b16 %v579, %v579
        %v596 = vpack.c.b16 %v580, %v580
        %v597 = vpack.c.b16 %v581, %v581
        %vm614 = vcmask 257024
        %615 = vst.msk [vmem:[%s252] sm:$0xf] %vm614, %v582
        %616 = vst.msk [vmem:[%s252 + $0x4] sm:$0xf] %vm614, %v583
        %617 = vst.msk [vmem:[%s252 + $0x8] sm:$0xf] %vm614, %v584
        %618 = vst.msk [vmem:[%s252 + $0xc] sm:$0xf] %vm614, %v585
        %619 = vst.msk [vmem:[%s252 + $0x10] sm:$0xf] %vm614, %v586
        %620 = vst.msk [vmem:[%s252 + $0x14] sm:$0xf] %vm614, %v587
        %621 = vst.msk [vmem:[%s252 + $0x18] sm:$0xf] %vm614, %v588
        %622 = vst.msk [vmem:[%s252 + $0x1c] sm:$0xf] %vm614, %v589
        %623 = vst.msk [vmem:[%s252 + $0x20] sm:$0xf] %vm614, %v590
        %624 = vst.msk [vmem:[%s252 + $0x24] sm:$0xf] %vm614, %v591
        %625 = vst.msk [vmem:[%s252 + $0x28] sm:$0xf] %vm614, %v592
        %626 = vst.msk [vmem:[%s252 + $0x2c] sm:$0xf] %vm614, %v593
        %627 = vst.msk [vmem:[%s252 + $0x30] sm:$0xf] %vm614, %v594
        %628 = vst.msk [vmem:[%s252 + $0x34] sm:$0xf] %vm614, %v595
        %629 = vst.msk [vmem:[%s252 + $0x38] sm:$0xf] %vm614, %v596
        %630 = vst.msk [vmem:[%s252 + $0x3c] sm:$0xf] %vm614, %v597
      $region40: #{tpu_custom_call.1} parent=31 // pred_fallthru
        _
      %s631 = smul.u32 16, %s19
      %p632 = scmp.lt.s32.totalorder %s631, 63
      %s633 = scalar_select %p632, %s631, 63
      %p634 = scmp.lt.s32.totalorder %s20, 0
      %s635 = scalar_select %p634, %s20, 0
      %s636 = sadd.s32 %s635, %s633
      %s637 = smul.addr %s636, 4
      %s638 = scalar_lea.vmem %s3, %s637
      // Predicated region
      $region41: #{tpu_custom_call.1} parent=31 // pred_check
        %p639 = pneg %p135
      $region42: #{tpu_custom_call.1} parent=31 // pred_check_branch
        %641 = sbr.rel (%p639) target = $region44
      $region43: #{tpu_custom_call.1} parent=31 // pred_region
        %s642 = smul.u32 16, %s19
      $region44: #{tpu_custom_call.1} parent=31 // pred_fallthru
        _
    $region32: #{tpu_custom_call.1} parent=5 // pred_fallthru
      _
    %p643 = scmp.le.s32.totalorder 2, %s9
    // Predicated region
    $region45: #{tpu_custom_call.1} parent=5 // pred_check
      %p644 = pneg %p643
    $region46: #{tpu_custom_call.1} parent=5 // pred_check_branch
      %646 = sbr.rel (%p644) target = $region48
    $region47: #{tpu_custom_call.1} parent=5 // pred_region
      %s647 = ssub.s32 %s9, 2
      // Predicated region
      $region49: #{tpu_custom_call.1} parent=47 // pred_check
        %p648 = pneg %p141
      $region50: #{tpu_custom_call.1} parent=47 // pred_check_branch
        %650 = sbr.rel (%p648) target = $region52
      $region51: #{tpu_custom_call.1} parent=47 // pred_region
        %s651 = smul.u32 16, %s22
        %p652 = scmp.lt.s32.totalorder %s651, 63
        %s653 = scalar_select %p652, %s651, 63
        %p654 = scmp.lt.s32.totalorder %s23, 0
        %s655 = scalar_select %p654, %s23, 0
        %s656 = sadd.s32 %s655, %s653
        %s657 = smul.addr %s656, 4
        %s658 = scalar_lea.vmem %s3, %s657
      $region52: #{tpu_custom_call.1} parent=47 // pred_fallthru
        _
    $region48: #{tpu_custom_call.1} parent=5 // pred_fallthru
      _
  $region6: #{tpu_custom_call.1} parent=0 // loop_footer
    %s13 = sadd.s32 1, %s9
  $region7: #{tpu_custom_call.1} parent=0 // loop_footer_branch
    %8 = sbr.rel target = $region3
  $region8: #{tpu_custom_call.1} parent=0 // loop_exit
    _

</llo_original>
